<compile_context>
chip_gen: v5e
topology: v5e:2x2
jax: 0.10.0
libtpu: 0.0.40
codegen_flags: <defaults>
</compile_context>

<pallas_src>
import numpy as np
import jax
import jax.numpy as jnp
from jax.experimental import pallas as pl
from jax.experimental.pallas import tpu as pltpu


def _make_kernel(Bt, Nv, Nq, G, matmul_dtype):
    """Build the per-grid-step kernel body (closes over static Python values only)."""
    L = Nv * Nq

    def kernel(v_ref, q_ref, wv_ref, bv_ref, wq_ref, bq_ref, hmat_ref, hbcol_ref,
               p_ref, logits_ref):
        # v_ref: (Bt*Nv, F), q_ref: (Bt*Nq, H) in matmul dtype (batch collapsed to rows).
        v2 = v_ref[...]
        q2 = q_ref[...]

        # ---- weight-normed Linear + ReLU projections: one fused MXU dot each ----
        v_ = jnp.maximum(
            jnp.dot(v2, wv_ref[...], preferred_element_type=jnp.float32) + bv_ref[...],
            0.0)                                                    # (Bt*Nv, K) f32
        q_ = jnp.maximum(
            jnp.dot(q2, wq_ref[...], preferred_element_type=jnp.float32) + bq_ref[...],
            0.0)                                                    # (Bt*Nq, K) f32

        # v-row mask: abs-sum of non-negative terms is 0 iff the row is exactly zero.
        rowsum = jnp.sum(jnp.abs(v2.astype(jnp.float32)), axis=-1, keepdims=True)

        K = v_.shape[-1]
        # Layout-free splits of the collapsed batch rows (Nv % 8 == 0, Nq % 8 == 0).
        v3 = v_.astype(matmul_dtype).reshape(Bt, Nv, K)
        q3 = q_.astype(matmul_dtype).reshape(Bt, Nq, K)
        hm = hmat_ref[...]                                          # (G, K) matmul dtype

        # ---- glimpse scaling as ONE broadcast multiply, materialized directly in the
        #      matmul dtype (no concat).  We scale v (not q) so the bilinear output
        #      lands as (Bt, G*Nv, Nq), which flattens straight into (b*G+g, i*Nq+j)
        #      output rows without any extra transpose. ----
        sv = (v3[:, None, :, :] * hm[None, :, None, :]).reshape(Bt, G * Nv, K)

        # ---- all G glimpses in ONE batched MXU matmul (contract K, batch Bt) ----
        lg = jax.lax.dot_general(
            sv, q3, dimension_numbers=(((2,), (2,)), ((0,), (0,))),
            preferred_element_type=jnp.float32)                     # (Bt, G*Nv, Nq) f32

        # ---- mask by broadcast (no materialized per-glimpse tiles); the 4D view is a
        #      layout-free split of leading/sublane dims only ----
        lg4 = lg.reshape(Bt, G, Nv, Nq)
        masked = jnp.where(rowsum.reshape(Bt, 1, Nv, 1) == 0.0, -jnp.inf, lg4)

        # Single sublane->lane relayout: flatten (Nv, Nq) onto lanes once, on the final
        # f32 block, so softmax is one lane-axis reduce and both stores are full
        # (Bt*G sublanes x L lanes) slabs.
        flat = masked.reshape(Bt * G, L)

        m = jnp.max(flat, axis=-1, keepdims=True)
        e = jnp.exp(flat - m)
        s = jnp.sum(e, axis=-1, keepdims=True)
        p_ref[...] = e * pl.reciprocal(s, approx=True)

        # h_bias is constant per (b, g) row -> a no-op for softmax; only the logits
        # output needs it.  (-inf + finite bias stays -inf for masked entries.)
        logits_ref[...] = flat + hbcol_ref[...]

    return kernel


def biattention(v, q, Wv, bv, Wq, bq, h_mat, h_bias, *,
                block_batch=4, matmul_dtype=jnp.bfloat16,
                vmem_limit_bytes=48 * 1024 * 1024):
    """BiAttention forward. Returns (p, logits), each (B, G, Nv, Nq) float32."""
    B, Nv, F = v.shape
    Bq, Nq, H = q.shape
    assert Bq == B
    K = Wv.shape[1]
    G = h_mat.shape[0]
    Bt = block_batch
    L = Nv * Nq
    assert B % Bt == 0, "block_batch must divide batch size"
    assert Nv % 8 == 0 and Nq % 8 == 0, "Nv/Nq must be multiples of 8 (sublane tiling)"
    assert (Bt * G) % 8 == 0, \
        "pick block_batch so block_batch*GLIMPSE is a multiple of 8 (unmasked stores)"

    # Collapse batch into rows outside the kernel (free metadata reshape) and stream
    # v/q in the matmul dtype: halves DMA bytes and removes two in-kernel cast passes.
    v2 = v.reshape(B * Nv, F).astype(matmul_dtype)
    q2 = q.reshape(B * Nq, H).astype(matmul_dtype)

    wv = Wv.astype(matmul_dtype)
    wq = Wq.astype(matmul_dtype)
    bv2 = bv.reshape(1, K).astype(jnp.float32)
    bq2 = bq.reshape(1, K).astype(jnp.float32)
    hm = h_mat.astype(matmul_dtype)                                  # (G, K)
    # Per-output-row (b*G+g) bias column; identical for every batch block -> constant
    # index_map, tiny (Bt*G, 1) VMEM block broadcast over lanes inside the kernel.
    hb_col = jnp.tile(h_bias.reshape(1, G).astype(jnp.float32), (Bt, 1)).reshape(Bt * G, 1)

    kernel = _make_kernel(Bt, Nv, Nq, G, matmul_dtype)

    grid_spec = pltpu.PrefetchScalarGridSpec(
        num_scalar_prefetch=0,
        grid=(B // Bt,),
        in_specs=[
            pl.BlockSpec((Bt * Nv, F), lambda b: (b, 0)),            # v rows (streamed)
            pl.BlockSpec((Bt * Nq, H), lambda b: (b, 0)),            # q rows (streamed)
            pl.BlockSpec((F, K), lambda b: (0, 0)),                  # Wv (constant)
            pl.BlockSpec((1, K), lambda b: (0, 0)),                  # bv
            pl.BlockSpec((H, K), lambda b: (0, 0)),                  # Wq (constant)
            pl.BlockSpec((1, K), lambda b: (0, 0)),                  # bq
            pl.BlockSpec((G, K), lambda b: (0, 0)),                  # h_mat (constant)
            pl.BlockSpec((Bt * G, 1), lambda b: (0, 0)),             # h_bias column
        ],
        out_specs=[
            pl.BlockSpec((Bt * G, L), lambda b: (b, 0)),             # p      (2D slab)
            pl.BlockSpec((Bt * G, L), lambda b: (b, 0)),             # logits (2D slab)
        ],
    )

    nbytes = lambda x: x.size * x.dtype.itemsize
    in_bytes = sum(nbytes(x) for x in (v2, q2, wv, bv2, wq, bq2, hm, hb_col))
    out_bytes = 2 * B * G * L * 4
    cost = pl.CostEstimate(
        flops=2 * B * Nv * F * K + 2 * B * Nq * H * K + 2 * B * G * Nv * Nq * K,
        transcendentals=B * G * L,
        bytes_accessed=in_bytes + out_bytes)

    p_flat, logits_flat = pl.pallas_call(
        kernel,
        out_shape=(jax.ShapeDtypeStruct((B * G, L), jnp.float32),
                   jax.ShapeDtypeStruct((B * G, L), jnp.float32)),
        grid_spec=grid_spec,
        compiler_params=pltpu.CompilerParams(
            dimension_semantics=("parallel",),
            vmem_limit_bytes=vmem_limit_bytes),
        cost_estimate=cost,
    )(v2, q2, wv, bv2, wq, bq2, hm, hb_col)

    # Free (metadata-only) reshapes back to the module's (B, G, Nv, Nq) layout.
    return (p_flat.reshape(B, G, Nv, Nq), logits_flat.reshape(B, G, Nv, Nq))


def ref_biattention(v, q, Wv, bv, Wq, bq, h_mat, h_bias):
    """Pure-JAX reference mirroring the PyTorch forward (eval mode), highest precision."""
    B, Nv, _ = v.shape
    _, Nq, _ = q.shape
    G = h_mat.shape[0]
    hp = jax.lax.Precision.HIGHEST
    v_ = jax.nn.relu(jnp.einsum('bvf,fk->bvk', v, Wv, precision=hp) + bv)   # (B, Nv, K)
    q_ = jax.nn.relu(jnp.einsum('bqh,hk->bqk', q, Wq, precision=hp) + bq)   # (B, Nq, K)
    logits = jnp.einsum('hk,bvk,bqk->bhvq', h_mat, v_, q_, precision=hp) \
        + h_bias.reshape(1, G, 1, 1)
    mask = (jnp.sum(jnp.abs(v), axis=2) == 0.0)                             # (B, Nv)
    logits = jnp.where(mask[:, None, :, None], -jnp.inf, logits)
    p = jax.nn.softmax(logits.reshape(B, G, Nv * Nq), axis=2).reshape(B, G, Nv, Nq)
    return p, logits


def _weight_norm(w_raw, g):
    """PyTorch weight_norm with dim=None: g * w / ||w||_F (g is a scalar)."""
    return g * w_raw / jnp.sqrt(jnp.sum(w_raw * w_raw))


if __name__ == "__main__":
    # Small config consistent with the module.
    B, Nv, Nq = 8, 16, 8
    IMG_FEAT_SIZE, HIDDEN_SIZE, BA_HIDDEN_SIZE, GLIMPSE = 32, 32, 64, 2

    key = jax.random.PRNGKey(0)
    keys = jax.random.split(key, 12)

    v = jax.random.normal(keys[0], (B, Nv, IMG_FEAT_SIZE), jnp.float32)
    q = jax.random.normal(keys[1], (B, Nq, HIDDEN_SIZE), jnp.float32)
    # zero some image-feature rows to exercise the v_mask path
    v = v.at[0, 3, :].set(0.0)
    v = v.at[1, 7, :].set(0.0)
    v = v.at[5, 0, :].set(0.0)

    # v_net / q_net Linear (weight-normed, dim=None): raw (K, in) like PyTorch + scalar g
    Wv_raw = jax.random.normal(keys[2], (BA_HIDDEN_SIZE, IMG_FEAT_SIZE), jnp.float32) * 0.1
    gv = jnp.abs(jax.random.normal(keys[3], (), jnp.float32)) + 1.0
    bv = jax.random.normal(keys[4], (BA_HIDDEN_SIZE,), jnp.float32) * 0.1
    Wq_raw = jax.random.normal(keys[5], (BA_HIDDEN_SIZE, HIDDEN_SIZE), jnp.float32) * 0.1
    gq = jnp.abs(jax.random.normal(keys[6], (), jnp.float32)) + 1.0
    bq = jax.random.normal(keys[7], (BA_HIDDEN_SIZE,), jnp.float32) * 0.1

    # h_mat (1, G, 1, K) normal_(), reparameterized by the outer weight_norm(dim=None)
    h_mat_raw = jax.random.normal(keys[8], (1, GLIMPSE, 1, BA_HIDDEN_SIZE), jnp.float32)
    g_hmat = jnp.abs(jax.random.normal(keys[9], (), jnp.float32)) + 1.0
    h_bias_raw = jax.random.normal(keys[10], (1, GLIMPSE, 1, 1), jnp.float32)

    # Effective (post weight-norm) parameters; linears transposed to (in, out)
    Wv = _weight_norm(Wv_raw, gv).T                                       # (F, K)
    Wq = _weight_norm(Wq_raw, gq).T                                       # (H, K)
    h_mat = _weight_norm(h_mat_raw, g_hmat).reshape(GLIMPSE, BA_HIDDEN_SIZE)  # (G, K)
    h_bias = h_bias_raw.reshape(GLIMPSE)                                  # (G,)

    p_ref_, logits_ref_ = ref_biattention(v, q, Wv, bv, Wq, bq, h_mat, h_bias)

    # f32-operand path: tight check (p tolerance also covers the approx EUP reciprocal).
    p32, lg32 = biattention(v, q, Wv, bv, Wq, bq, h_mat, h_bias,
                            block_batch=4, matmul_dtype=jnp.float32)
    jax.block_until_ready((p32, lg32))
    assert np.allclose(np.asarray(lg32), np.asarray(logits_ref_), rtol=5e-3, atol=5e-3)
    assert np.allclose(np.asarray(p32), np.asarray(p_ref_), rtol=5e-2, atol=1e-3)

    # Fast default path: bf16 streamed inputs / matmul operands, f32 accumulation.
    p16, lg16 = biattention(v, q, Wv, bv, Wq, bq, h_mat, h_bias,
                            block_batch=4, matmul_dtype=jnp.bfloat16)
    jax.block_until_ready((p16, lg16))
    assert np.allclose(np.asarray(lg16), np.asarray(logits_ref_), rtol=5e-2, atol=5e-2)
    assert np.allclose(np.asarray(p16), np.asarray(p_ref_), rtol=5e-2, atol=3e-3)

    assert p32.shape == (B, GLIMPSE, Nv, Nq) and lg32.shape == (B, GLIMPSE, Nv, Nq)
    print("KERNEL_OK")
</pallas_src>

<mosaic_0001>
module attributes {stable_mosaic.version = 11 : i64} {
  func.func @kernel(%arg0: i32, %arg1: memref<64x32xf32, #tpu.memory_space<vmem>>, %arg2: memref<32x32xf32, #tpu.memory_space<vmem>>, %arg3: memref<32x64xf32, #tpu.memory_space<vmem>>, %arg4: memref<1x64xf32, #tpu.memory_space<vmem>>, %arg5: memref<32x64xf32, #tpu.memory_space<vmem>>, %arg6: memref<1x64xf32, #tpu.memory_space<vmem>>, %arg7: memref<2x64xf32, #tpu.memory_space<vmem>>, %arg8: memref<8x1xf32, #tpu.memory_space<vmem>>, %arg9: memref<8x128xf32, #tpu.memory_space<vmem>>, %arg10: memref<8x128xf32, #tpu.memory_space<vmem>>) attributes {dimension_semantics = [#tpu.dimension_semantics<parallel>], iteration_bounds = array<i64: 2>, scalar_prefetch = 0 : i64, scratch_operands = 0 : i64, tpu.core_type = #tpu.core_type<tc>, window_params = [{transform_indices = @transform_0, window_bounds = array<i64: 64, 32>}, {transform_indices = @transform_1, window_bounds = array<i64: 32, 32>}, {pipeline_mode = #tpu.pipeline_mode<synchronous>, transform_indices = @transform_2, window_bounds = array<i64: 32, 64>}, {pipeline_mode = #tpu.pipeline_mode<synchronous>, transform_indices = @transform_3, window_bounds = array<i64: 1, 64>}, {pipeline_mode = #tpu.pipeline_mode<synchronous>, transform_indices = @transform_4, window_bounds = array<i64: 32, 64>}, {pipeline_mode = #tpu.pipeline_mode<synchronous>, transform_indices = @transform_5, window_bounds = array<i64: 1, 64>}, {pipeline_mode = #tpu.pipeline_mode<synchronous>, transform_indices = @transform_6, window_bounds = array<i64: 2, 64>}, {pipeline_mode = #tpu.pipeline_mode<synchronous>, transform_indices = @transform_7, window_bounds = array<i64: 8, 1>}, {transform_indices = @transform_8, window_bounds = array<i64: 8, 128>}, {transform_indices = @transform_9, window_bounds = array<i64: 8, 128>}]} {
    %c0 = arith.constant 0 : index
    %c0_0 = arith.constant 0 : index
    %0 = vector.load %arg1[%c0, %c0_0] : memref<64x32xf32, #tpu.memory_space<vmem>>, vector<64x32xf32>
    %c0_1 = arith.constant 0 : index
    %c0_2 = arith.constant 0 : index
    %1 = vector.load %arg2[%c0_1, %c0_2] : memref<32x32xf32, #tpu.memory_space<vmem>>, vector<32x32xf32>
    %c0_3 = arith.constant 0 : index
    %c0_4 = arith.constant 0 : index
    %2 = vector.load %arg3[%c0_3, %c0_4] : memref<32x64xf32, #tpu.memory_space<vmem>>, vector<32x64xf32>
    %cst = arith.constant dense<0.000000e+00> : vector<64x64xf32>
    %3 = tpu.matmul %0, %2, %cst {dimension_numbers = #tpu.dot_dimension_numbers<[1], [0], [0], [1], [0, 0, 1, 1], [], []>} : vector<64x32xf32>, vector<32x64xf32>, vector<64x64xf32> -> vector<64x64xf32>
    %c0_5 = arith.constant 0 : index
    %c0_6 = arith.constant 0 : index
    %4 = vector.load %arg4[%c0_5, %c0_6] : memref<1x64xf32, #tpu.memory_space<vmem>>, vector<1x64xf32>
    %5 = vector.broadcast %4 : vector<1x64xf32> to vector<64x64xf32>
    %6 = arith.addf %3, %5 : vector<64x64xf32>
    %cst_7 = arith.constant 0.000000e+00 : f32
    %7 = vector.broadcast %cst_7 : f32 to vector<64x64xf32>
    %8 = arith.maximumf %6, %7 : vector<64x64xf32>
    %c0_8 = arith.constant 0 : index
    %c0_9 = arith.constant 0 : index
    %9 = vector.load %arg5[%c0_8, %c0_9] : memref<32x64xf32, #tpu.memory_space<vmem>>, vector<32x64xf32>
    %cst_10 = arith.constant dense<0.000000e+00> : vector<32x64xf32>
    %10 = tpu.matmul %1, %9, %cst_10 {dimension_numbers = #tpu.dot_dimension_numbers<[1], [0], [0], [1], [0, 0, 1, 1], [], []>} : vector<32x32xf32>, vector<32x64xf32>, vector<32x64xf32> -> vector<32x64xf32>
    %c0_11 = arith.constant 0 : index
    %c0_12 = arith.constant 0 : index
    %11 = vector.load %arg6[%c0_11, %c0_12] : memref<1x64xf32, #tpu.memory_space<vmem>>, vector<1x64xf32>
    %12 = vector.broadcast %11 : vector<1x64xf32> to vector<32x64xf32>
    %13 = arith.addf %10, %12 : vector<32x64xf32>
    %cst_13 = arith.constant 0.000000e+00 : f32
    %14 = vector.broadcast %cst_13 : f32 to vector<32x64xf32>
    %15 = arith.maximumf %13, %14 : vector<32x64xf32>
    %16 = math.absf %0 : vector<64x32xf32>
    %cst_14 = arith.constant dense<0.000000e+00> : vector<64xf32>
    %17 = vector.multi_reduction <add>, %16, %cst_14 [1] : vector<64x32xf32> to vector<64xf32>
    %18 = vector.shape_cast %17 : vector<64xf32> to vector<64x1xf32>
    %19 = vector.shape_cast %8 : vector<64x64xf32> to vector<4x16x64xf32>
    %20 = vector.shape_cast %15 : vector<32x64xf32> to vector<4x8x64xf32>
    %c0_15 = arith.constant 0 : index
    %c0_16 = arith.constant 0 : index
    %21 = vector.load %arg7[%c0_15, %c0_16] : memref<2x64xf32, #tpu.memory_space<vmem>>, vector<2x64xf32>
    %22 = vector.shape_cast %19 : vector<4x16x64xf32> to vector<4x1x16x64xf32>
    %23 = vector.shape_cast %21 : vector<2x64xf32> to vector<1x2x1x64xf32>
    %24 = vector.broadcast %22 : vector<4x1x16x64xf32> to vector<4x2x16x64xf32>
    %25 = vector.broadcast %23 : vector<1x2x1x64xf32> to vector<4x2x16x64xf32>
    %26 = arith.mulf %24, %25 : vector<4x2x16x64xf32>
    %27 = vector.shape_cast %26 : vector<4x2x16x64xf32> to vector<4x32x64xf32>
    %cst_17 = arith.constant dense<0.000000e+00> : vector<4x32x8xf32>
    %28 = tpu.matmul %27, %20, %cst_17 {dimension_numbers = #tpu.dot_dimension_numbers<[2], [2], [1], [1], [0, 0, 0, 1, 1, 1], [0], [0]>} : vector<4x32x64xf32>, vector<4x8x64xf32>, vector<4x32x8xf32> -> vector<4x32x8xf32>
    %29 = vector.shape_cast %28 : vector<4x32x8xf32> to vector<4x2x16x8xf32>
    %30 = vector.shape_cast %18 : vector<64x1xf32> to vector<4x1x16x1xf32>
    %cst_18 = arith.constant 0.000000e+00 : f32
    %31 = vector.broadcast %cst_18 : f32 to vector<4x1x16x1xf32>
    %32 = arith.cmpf oeq, %30, %31 : vector<4x1x16x1xf32>
    %cst_19 = arith.constant 0xFF800000 : f32
    %33 = vector.shape_cast %32 : vector<4x1x16x1xi1> to vector<4x1x16x1xi1>
    %34 = vector.broadcast %33 : vector<4x1x16x1xi1> to vector<4x2x16x8xi1>
    %35 = vector.broadcast %cst_19 : f32 to vector<4x2x16x8xf32>
    %36 = arith.select %34, %35, %29 : vector<4x2x16x8xi1>, vector<4x2x16x8xf32>
    %37 = vector.shape_cast %36 : vector<4x2x16x8xf32> to vector<8x128xf32>
    %cst_20 = arith.constant dense<0xFF800000> : vector<8xf32>
    %38 = vector.multi_reduction <maximumf>, %37, %cst_20 [1] : vector<8x128xf32> to vector<8xf32>
    %39 = vector.shape_cast %38 : vector<8xf32> to vector<8x1xf32>
    %40 = vector.broadcast %39 : vector<8x1xf32> to vector<8x128xf32>
    %41 = arith.subf %37, %40 : vector<8x128xf32>
    %42 = math.exp %41 : vector<8x128xf32>
    %cst_21 = arith.constant dense<0.000000e+00> : vector<8xf32>
    %43 = vector.multi_reduction <add>, %42, %cst_21 [1] : vector<8x128xf32> to vector<8xf32>
    %44 = vector.shape_cast %43 : vector<8xf32> to vector<8x1xf32>
    %45 = tpu.reciprocal %44 {approx = true} : vector<8x1xf32> -> vector<8x1xf32>
    %46 = vector.broadcast %45 : vector<8x1xf32> to vector<8x128xf32>
    %47 = arith.mulf %42, %46 : vector<8x128xf32>
    %c0_22 = arith.constant 0 : index
    %c0_23 = arith.constant 0 : index
    %48 = vector.load %arg9[%c0_22, %c0_23] : memref<8x128xf32, #tpu.memory_space<vmem>>, vector<8x128xf32>
    tpu.vector_store %arg9[%c0_22, %c0_23], %47 {strides = array<i32>} : memref<8x128xf32, #tpu.memory_space<vmem>>, vector<8x128xf32>,
    %c0_24 = arith.constant 0 : index
    %c0_25 = arith.constant 0 : index
    %49 = vector.load %arg8[%c0_24, %c0_25] : memref<8x1xf32, #tpu.memory_space<vmem>>, vector<8x1xf32>
    %50 = vector.broadcast %49 : vector<8x1xf32> to vector<8x128xf32>
    %51 = arith.addf %37, %50 : vector<8x128xf32>
    %c0_26 = arith.constant 0 : index
    %c0_27 = arith.constant 0 : index
    %52 = vector.load %arg10[%c0_26, %c0_27] : memref<8x128xf32, #tpu.memory_space<vmem>>, vector<8x128xf32>
    tpu.vector_store %arg10[%c0_26, %c0_27], %51 {strides = array<i32>} : memref<8x128xf32, #tpu.memory_space<vmem>>, vector<8x128xf32>,
    return
  }
  func.func @transform_0(%arg0: i32) -> (i32, i32) {
    %c0_i32 = arith.constant 0 : i32
    %c0_i32_0 = arith.constant 0 : i32
    return %arg0, %c0_i32 : i32, i32
  }
  func.func @transform_1(%arg0: i32) -> (i32, i32) {
    %c0_i32 = arith.constant 0 : i32
    %c0_i32_0 = arith.constant 0 : i32
    return %arg0, %c0_i32 : i32, i32
  }
  func.func @transform_2(%arg0: i32) -> (i32, i32) {
    %c0_i32 = arith.constant 0 : i32
    %c0_i32_0 = arith.constant 0 : i32
    %c0_i32_1 = arith.constant 0 : i32
    return %c0_i32, %c0_i32_0 : i32, i32
  }
  func.func @transform_3(%arg0: i32) -> (i32, i32) {
    %c0_i32 = arith.constant 0 : i32
    %c0_i32_0 = arith.constant 0 : i32
    %c0_i32_1 = arith.constant 0 : i32
    return %c0_i32, %c0_i32_0 : i32, i32
  }
  func.func @transform_4(%arg0: i32) -> (i32, i32) {
    %c0_i32 = arith.constant 0 : i32
    %c0_i32_0 = arith.constant 0 : i32
    %c0_i32_1 = arith.constant 0 : i32
    return %c0_i32, %c0_i32_0 : i32, i32
  }
  func.func @transform_5(%arg0: i32) -> (i32, i32) {
    %c0_i32 = arith.constant 0 : i32
    %c0_i32_0 = arith.constant 0 : i32
    %c0_i32_1 = arith.constant 0 : i32
    return %c0_i32, %c0_i32_0 : i32, i32
  }
  func.func @transform_6(%arg0: i32) -> (i32, i32) {
    %c0_i32 = arith.constant 0 : i32
    %c0_i32_0 = arith.constant 0 : i32
    %c0_i32_1 = arith.constant 0 : i32
    return %c0_i32, %c0_i32_0 : i32, i32
  }
  func.func @transform_7(%arg0: i32) -> (i32, i32) {
    %c0_i32 = arith.constant 0 : i32
    %c0_i32_0 = arith.constant 0 : i32
    %c0_i32_1 = arith.constant 0 : i32
    return %c0_i32, %c0_i32_0 : i32, i32
  }
  func.func @transform_8(%arg0: i32) -> (i32, i32) {
    %c0_i32 = arith.constant 0 : i32
    %c0_i32_0 = arith.constant 0 : i32
    return %arg0, %c0_i32 : i32, i32
  }
  func.func @transform_9(%arg0: i32) -> (i32, i32) {
    %c0_i32 = arith.constant 0 : i32
    %c0_i32_0 = arith.constant 0 : i32
    return %arg0, %c0_i32 : i32, i32
  }
}

</mosaic_0001>

<llo_original>
// kernel: tpu_custom_call.1
$region0: #{tpu_custom_call.1}
  #allocation0 [shape = 'u32[]', space=smem, size = 0x4, offset = 0x4, fixed_abs, tag = 'smem constant byte address 0x4 - core index']
  #allocation1 [shape = 'u32[72,128]{1,0:T(1,128)}', space=vmem, size = 0x9000, scoped, tag = 'internal scratch']
  %s0 = inlined_call_operand.vmem [shape: f32[128,32], index: 0, kind: input, shape index: {}]
  %s1 = inlined_call_operand.vmem [shape: f32[64,32], index: 1, kind: input, shape index: {}]
  %s2 = inlined_call_operand.vmem [shape: f32[32,64], index: 2, kind: input, shape index: {}]
  %s3 = inlined_call_operand.vmem [shape: f32[1,64], index: 3, kind: input, shape index: {}]
  %s4 = inlined_call_operand.vmem [shape: f32[32,64], index: 4, kind: input, shape index: {}]
  %s5 = inlined_call_operand.vmem [shape: f32[1,64], index: 5, kind: input, shape index: {}]
  %s6 = inlined_call_operand.vmem [shape: f32[2,64], index: 6, kind: input, shape index: {}]
  %s7 = inlined_call_operand.vmem [shape: f32[8,1], index: 7, kind: input, shape index: {}]
  %s8 = inlined_call_operand.hbm [shape: f32[16,128], index: 8, kind: output, shape index: {0}]
  %s9 = inlined_call_operand.hbm [shape: f32[16,128], index: 9, kind: output, shape index: {1}]
  %10 = xla_tuple %s8, %s9
  %s11 = sld [smem:[#allocation0]]
  $region73: #{tpu_custom_call.1} parent=0
    _
  %s13 = ssub.s32 1, %s11
  %s14 = scalar_select 0, %s13, %s11
  $region1: #{tpu_custom_call.1} parent=0
    #allocation2 [shape = 'u8[8192]{0}', space=vmem, size = 0x2000, scoped, tag = 'output window, operand 0']
    #allocation3 [shape = 's32[2]{0}', space=sflag, size = 0x8, scoped, tag = 'scoped memory for tpu_custom_call.1']
    #allocation4 [shape = 'u8[8192]{0}', space=vmem, size = 0x2000, scoped, tag = 'output window, operand 1']
    #allocation5 [shape = 's32[2]{0}', space=sflag, size = 0x8, scoped, tag = 'scoped memory for tpu_custom_call.1']
    %15 = vsyncpa [#allocation3], 0
    %s16 = scalar_lea.sflag [#allocation3], 1
    %17 = vsyncpa %s16, 0
    %18 = vsyncpa [#allocation5], 0
    %s19 = scalar_lea.sflag [#allocation5], 1
    %20 = vsyncpa %s19, 0
    loop: start=0, step=1, limit=4
    $region2: #{tpu_custom_call.1} parent=1 // loop_pre_header
      _
    $region3: #{tpu_custom_call.1} parent=1 // loop_header
      %s22 = sphi 0, %s26
      %p23 = scmp.ge.s32.totalorder %s22, 4
      %s32 = sphi 0, %s34
      %s35 = sphi 0, %s32
      %s36 = sphi 0, %s35
      %s52 = sphi 0, %s36
      %s58 = sphi 0, %s60
      %s61 = sphi 0, %s58
      %s62 = sphi 0, %s61
      %s78 = sphi 0, %s62
      %s82 = sphi 0, %s82
      %s84 = sphi 0, %s82
      %s85 = sphi 0, %s84
      %s99 = sphi 0, %s85
      %s103 = sphi 0, %s103
      %s105 = sphi 0, %s103
      %s106 = sphi 0, %s105
      %s120 = sphi 0, %s106
      %s124 = sphi 0, %s124
      %s126 = sphi 0, %s124
      %s127 = sphi 0, %s126
      %s141 = sphi 0, %s127
      %s145 = sphi 0, %s145
      %s147 = sphi 0, %s145
      %s148 = sphi 0, %s147
      %s162 = sphi 0, %s148
      %s166 = sphi 0, %s166
      %s168 = sphi 0, %s166
      %s169 = sphi 0, %s168
      %s183 = sphi 0, %s169
      %s187 = sphi 0, %s187
      %s189 = sphi 0, %s187
      %s190 = sphi 0, %s189
      %s204 = sphi 0, %s190
      %s210 = sphi 0, %s212
      %s213 = sphi 0, %s210
      %s214 = sphi 0, %s213
      %s230 = sphi 0, %s214
      %s236 = sphi 0, %s238
      %s239 = sphi 0, %s236
      %s240 = sphi 0, %s239
      %s256 = sphi 0, %s240
    $region4: #{tpu_custom_call.1} parent=1 // loop_header_branch
      %25 = sbr.rel (%p23) target = $region8
    $region5: #{tpu_custom_call.1} parent=1 // loop_body
      %s27 = ssub.s32 %s22, 1
      %s28 = ssub.s32 %s22, 2
      %s29 = sadd.s32 %s22, 1
      %s30 = ssub.s32 %s22, %s29
      %p31 = scmp.eq.s32.totalorder %s30, 0
      %s33 = sadd.s32 %s32, 1
      %s34 = scalar_select %p31, %s32, %s33
      %p37 = pneg %p31
      %p38 = scmp.eq.s32.totalorder %s22, 1
      %p39 = por %p37, %p38
      %p40 = scmp.ne.s32.totalorder %s32, %s35
      %p41 = scmp.eq.s32.totalorder %s22, 0
      %p42 = por %p40, %p41
      %p43 = scmp.ne.s32.totalorder %s32, %s35
      %p44 = scmp.eq.s32.totalorder %s27, 1
      %p45 = por %p43, %p44
      %p46 = scmp.ne.s32.totalorder %s35, %s36
      %p47 = scmp.eq.s32.totalorder %s27, 0
      %p48 = por %p46, %p47
      %p49 = scmp.ne.s32.totalorder %s35, %s36
      %p50 = scmp.eq.s32.totalorder %s28, 1
      %p51 = por %p49, %p50
      %p53 = scmp.ne.s32.totalorder %s36, %s52
      %p54 = scmp.eq.s32.totalorder %s28, 0
      %p55 = por %p53, %p54
      %s56 = ssub.s32 %s22, %s29
      %p57 = scmp.eq.s32.totalorder %s56, 0
      %s59 = sadd.s32 %s58, 1
      %s60 = scalar_select %p57, %s58, %s59
      %p63 = pneg %p57
      %p64 = scmp.eq.s32.totalorder %s22, 1
      %p65 = por %p63, %p64
      %p66 = scmp.ne.s32.totalorder %s58, %s61
      %p67 = scmp.eq.s32.totalorder %s22, 0
      %p68 = por %p66, %p67
      %p69 = scmp.ne.s32.totalorder %s58, %s61
      %p70 = scmp.eq.s32.totalorder %s27, 1
      %p71 = por %p69, %p70
      %p72 = scmp.ne.s32.totalorder %s61, %s62
      %p73 = scmp.eq.s32.totalorder %s27, 0
      %p74 = por %p72, %p73
      %p75 = scmp.ne.s32.totalorder %s61, %s62
      %p76 = scmp.eq.s32.totalorder %s28, 1
      %p77 = por %p75, %p76
      %p79 = scmp.ne.s32.totalorder %s62, %s78
      %p80 = scmp.eq.s32.totalorder %s28, 0
      %p81 = por %p79, %p80
      %s83 = sadd.s32 %s82, 1
      %p86 = scmp.eq.s32.totalorder %s22, 1
      %p87 = scmp.ne.s32.totalorder %s82, %s84
      %p88 = scmp.eq.s32.totalorder %s22, 0
      %p89 = por %p87, %p88
      %p90 = scmp.ne.s32.totalorder %s82, %s84
      %p91 = scmp.eq.s32.totalorder %s27, 1
      %p92 = por %p90, %p91
      %p93 = scmp.ne.s32.totalorder %s84, %s85
      %p94 = scmp.eq.s32.totalorder %s27, 0
      %p95 = por %p93, %p94
      %p96 = scmp.ne.s32.totalorder %s84, %s85
      %p97 = scmp.eq.s32.totalorder %s28, 1
      %p98 = por %p96, %p97
      %p100 = scmp.ne.s32.totalorder %s85, %s99
      %p101 = scmp.eq.s32.totalorder %s28, 0
      %p102 = por %p100, %p101
      %s104 = sadd.s32 %s103, 1
      %p107 = scmp.eq.s32.totalorder %s22, 1
      %p108 = scmp.ne.s32.totalorder %s103, %s105
      %p109 = scmp.eq.s32.totalorder %s22, 0
      %p110 = por %p108, %p109
      %p111 = scmp.ne.s32.totalorder %s103, %s105
      %p112 = scmp.eq.s32.totalorder %s27, 1
      %p113 = por %p111, %p112
      %p114 = scmp.ne.s32.totalorder %s105, %s106
      %p115 = scmp.eq.s32.totalorder %s27, 0
      %p116 = por %p114, %p115
      %p117 = scmp.ne.s32.totalorder %s105, %s106
      %p118 = scmp.eq.s32.totalorder %s28, 1
      %p119 = por %p117, %p118
      %p121 = scmp.ne.s32.totalorder %s106, %s120
      %p122 = scmp.eq.s32.totalorder %s28, 0
      %p123 = por %p121, %p122
      %s125 = sadd.s32 %s124, 1
      %p128 = scmp.eq.s32.totalorder %s22, 1
      %p129 = scmp.ne.s32.totalorder %s124, %s126
      %p130 = scmp.eq.s32.totalorder %s22, 0
      %p131 = por %p129, %p130
      %p132 = scmp.ne.s32.totalorder %s124, %s126
      %p133 = scmp.eq.s32.totalorder %s27, 1
      %p134 = por %p132, %p133
      %p135 = scmp.ne.s32.totalorder %s126, %s127
      %p136 = scmp.eq.s32.totalorder %s27, 0
      %p137 = por %p135, %p136
      %p138 = scmp.ne.s32.totalorder %s126, %s127
      %p139 = scmp.eq.s32.totalorder %s28, 1
      %p140 = por %p138, %p139
      %p142 = scmp.ne.s32.totalorder %s127, %s141
      %p143 = scmp.eq.s32.totalorder %s28, 0
      %p144 = por %p142, %p143
      %s146 = sadd.s32 %s145, 1
      %p149 = scmp.eq.s32.totalorder %s22, 1
      %p150 = scmp.ne.s32.totalorder %s145, %s147
      %p151 = scmp.eq.s32.totalorder %s22, 0
      %p152 = por %p150, %p151
      %p153 = scmp.ne.s32.totalorder %s145, %s147
      %p154 = scmp.eq.s32.totalorder %s27, 1
      %p155 = por %p153, %p154
      %p156 = scmp.ne.s32.totalorder %s147, %s148
      %p157 = scmp.eq.s32.totalorder %s27, 0
      %p158 = por %p156, %p157
      %p159 = scmp.ne.s32.totalorder %s147, %s148
      %p160 = scmp.eq.s32.totalorder %s28, 1
      %p161 = por %p159, %p160
      %p163 = scmp.ne.s32.totalorder %s148, %s162
      %p164 = scmp.eq.s32.totalorder %s28, 0
      %p165 = por %p163, %p164
      %s167 = sadd.s32 %s166, 1
      %p170 = scmp.eq.s32.totalorder %s22, 1
      %p171 = scmp.ne.s32.totalorder %s166, %s168
      %p172 = scmp.eq.s32.totalorder %s22, 0
      %p173 = por %p171, %p172
      %p174 = scmp.ne.s32.totalorder %s166, %s168
      %p175 = scmp.eq.s32.totalorder %s27, 1
      %p176 = por %p174, %p175
      %p177 = scmp.ne.s32.totalorder %s168, %s169
      %p178 = scmp.eq.s32.totalorder %s27, 0
      %p179 = por %p177, %p178
      %p180 = scmp.ne.s32.totalorder %s168, %s169
      %p181 = scmp.eq.s32.totalorder %s28, 1
      %p182 = por %p180, %p181
      %p184 = scmp.ne.s32.totalorder %s169, %s183
      %p185 = scmp.eq.s32.totalorder %s28, 0
      %p186 = por %p184, %p185
      %s188 = sadd.s32 %s187, 1
      %p191 = scmp.eq.s32.totalorder %s22, 1
      %p192 = scmp.ne.s32.totalorder %s187, %s189
      %p193 = scmp.eq.s32.totalorder %s22, 0
      %p194 = por %p192, %p193
      %p195 = scmp.ne.s32.totalorder %s187, %s189
      %p196 = scmp.eq.s32.totalorder %s27, 1
      %p197 = por %p195, %p196
      %p198 = scmp.ne.s32.totalorder %s189, %s190
      %p199 = scmp.eq.s32.totalorder %s27, 0
      %p200 = por %p198, %p199
      %p201 = scmp.ne.s32.totalorder %s189, %s190
      %p202 = scmp.eq.s32.totalorder %s28, 1
      %p203 = por %p201, %p202
      %p205 = scmp.ne.s32.totalorder %s190, %s204
      %p206 = scmp.eq.s32.totalorder %s28, 0
      %p207 = por %p205, %p206
      %s208 = ssub.s32 %s22, %s29
      %p209 = scmp.eq.s32.totalorder %s208, 0
      %s211 = sadd.s32 %s210, 1
      %s212 = scalar_select %p209, %s210, %s211
      %p215 = pneg %p209
      %p216 = scmp.eq.s32.totalorder %s22, 1
      %p217 = por %p215, %p216
      %p218 = scmp.ne.s32.totalorder %s210, %s213
      %p219 = scmp.eq.s32.totalorder %s22, 0
      %p220 = por %p218, %p219
      %p221 = scmp.ne.s32.totalorder %s210, %s213
      %p222 = scmp.eq.s32.totalorder %s27, 1
      %p223 = por %p221, %p222
      %p224 = scmp.ne.s32.totalorder %s213, %s214
      %p225 = scmp.eq.s32.totalorder %s27, 0
      %p226 = por %p224, %p225
      %p227 = scmp.ne.s32.totalorder %s213, %s214
      %p228 = scmp.eq.s32.totalorder %s28, 1
      %p229 = por %p227, %p228
      %p231 = scmp.ne.s32.totalorder %s214, %s230
      %p232 = scmp.eq.s32.totalorder %s28, 0
      %p233 = por %p231, %p232
      %s234 = ssub.s32 %s22, %s29
      %p235 = scmp.eq.s32.totalorder %s234, 0
      %s237 = sadd.s32 %s236, 1
      %s238 = scalar_select %p235, %s236, %s237
      %p241 = pneg %p235
      %p242 = scmp.eq.s32.totalorder %s22, 1
      %p243 = por %p241, %p242
      %p244 = scmp.ne.s32.totalorder %s236, %s239
      %p245 = scmp.eq.s32.totalorder %s22, 0
      %p246 = por %p244, %p245
      %p247 = scmp.ne.s32.totalorder %s236, %s239
      %p248 = scmp.eq.s32.totalorder %s27, 1
      %p249 = por %p247, %p248
      %p250 = scmp.ne.s32.totalorder %s239, %s240
      %p251 = scmp.eq.s32.totalorder %s27, 0
      %p252 = por %p250, %p251
      %p253 = scmp.ne.s32.totalorder %s239, %s240
      %p254 = scmp.eq.s32.totalorder %s28, 1
      %p255 = por %p253, %p254
      %p257 = scmp.ne.s32.totalorder %s240, %s256
      %p258 = scmp.eq.s32.totalorder %s28, 0
      %p259 = por %p257, %p258
      %p260 = scmp.le.s32.totalorder 1, %s22
      %p261 = scmp.lt.s32.totalorder %s22, 3
      %p262 = pnand %p260, %p261
      %p263 = pneg %p262
      // Predicated region
      $region9: #{tpu_custom_call.1} parent=5 // pred_check
        _
      $region10: #{tpu_custom_call.1} parent=5 // pred_check_branch
        %265 = sbr.rel (%p262) target = $region12
      $region11: #{tpu_custom_call.1} parent=5 // pred_region
        %s266 = ssub.s32 %s22, 1
        // Predicated region
        $region13: #{tpu_custom_call.1} parent=11 // pred_check
          %p267 = pneg %p95
        $region14: #{tpu_custom_call.1} parent=11 // pred_check_branch
          %269 = sbr.rel (%p267) target = $region16
        $region15: #{tpu_custom_call.1} parent=11 // pred_region
          _
        $region16: #{tpu_custom_call.1} parent=11 // pred_fallthru
          _
        // Predicated region
        $region17: #{tpu_custom_call.1} parent=11 // pred_check
          %p270 = pneg %p116
        $region18: #{tpu_custom_call.1} parent=11 // pred_check_branch
          %272 = sbr.rel (%p270) target = $region20
        $region19: #{tpu_custom_call.1} parent=11 // pred_region
          _
        $region20: #{tpu_custom_call.1} parent=11 // pred_fallthru
          _
        // Predicated region
        $region21: #{tpu_custom_call.1} parent=11 // pred_check
          %p273 = pneg %p137
        $region22: #{tpu_custom_call.1} parent=11 // pred_check_branch
          %275 = sbr.rel (%p273) target = $region24
        $region23: #{tpu_custom_call.1} parent=11 // pred_region
          _
        $region24: #{tpu_custom_call.1} parent=11 // pred_fallthru
          _
        // Predicated region
        $region25: #{tpu_custom_call.1} parent=11 // pred_check
          %p276 = pneg %p158
        $region26: #{tpu_custom_call.1} parent=11 // pred_check_branch
          %278 = sbr.rel (%p276) target = $region28
        $region27: #{tpu_custom_call.1} parent=11 // pred_region
          _
        $region28: #{tpu_custom_call.1} parent=11 // pred_fallthru
          _
        // Predicated region
        $region29: #{tpu_custom_call.1} parent=11 // pred_check
          %p279 = pneg %p179
        $region30: #{tpu_custom_call.1} parent=11 // pred_check_branch
          %281 = sbr.rel (%p279) target = $region32
        $region31: #{tpu_custom_call.1} parent=11 // pred_region
          _
        $region32: #{tpu_custom_call.1} parent=11 // pred_fallthru
          _
        // Predicated region
        $region33: #{tpu_custom_call.1} parent=11 // pred_check
          %p282 = pneg %p200
        $region34: #{tpu_custom_call.1} parent=11 // pred_check_branch
          %284 = sbr.rel (%p282) target = $region36
        $region35: #{tpu_custom_call.1} parent=11 // pred_region
          _
        $region36: #{tpu_custom_call.1} parent=11 // pred_fallthru
          _
      $region12: #{tpu_custom_call.1} parent=5 // pred_fallthru
        _
      %p285 = scmp.lt.s32.totalorder %s22, 2
      // Predicated region
      $region37: #{tpu_custom_call.1} parent=5 // pred_check
        %p286 = pneg %p285
      $region38: #{tpu_custom_call.1} parent=5 // pred_check_branch
        %288 = sbr.rel (%p286) target = $region40
      $region39: #{tpu_custom_call.1} parent=5 // pred_region
        // Predicated region
        $region41: #{tpu_custom_call.1} parent=39 // pred_check
          %p289 = pneg %p42
        $region42: #{tpu_custom_call.1} parent=39 // pred_check_branch
          %291 = sbr.rel (%p289) target = $region44
        $region43: #{tpu_custom_call.1} parent=39 // pred_region
          %s292 = smul.u32 8, %s22
          %p293 = scmp.lt.s32.totalorder %s292, 15
          %s294 = scalar_select %p293, %s292, 15
          %s295 = smul.addr %s294, 8
          %s296 = scalar_lea.vmem %s0, %s295
          %s297 = smul.u32 8, %s22
        $region44: #{tpu_custom_call.1} parent=39 // pred_fallthru
          _
        // Predicated region
        $region45: #{tpu_custom_call.1} parent=39 // pred_check
          %p298 = pneg %p68
        $region46: #{tpu_custom_call.1} parent=39 // pred_check_branch
          %300 = sbr.rel (%p298) target = $region48
        $region47: #{tpu_custom_call.1} parent=39 // pred_region
          %s301 = smul.u32 4, %s22
          %p302 = scmp.lt.s32.totalorder %s301, 7
          %s303 = scalar_select %p302, %s301, 7
          %s304 = smul.addr %s303, 8
          %s305 = scalar_lea.vmem %s1, %s304
          %s306 = smul.u32 4, %s22
        $region48: #{tpu_custom_call.1} parent=39 // pred_fallthru
          _
      $region40: #{tpu_custom_call.1} parent=5 // pred_fallthru
        _
      %p307 = scmp.le.s32.totalorder 1, %s22
      %p308 = scmp.lt.s32.totalorder %s22, 3
      %p309 = pnand %p307, %p308
      %p310 = pneg %p309
      // Predicated region
      $region49: #{tpu_custom_call.1} parent=5 // pred_check
        _
      $region50: #{tpu_custom_call.1} parent=5 // pred_check_branch
        %312 = sbr.rel (%p309) target = $region52
      $region51: #{tpu_custom_call.1} parent=5 // pred_region
        %s313 = ssub.s32 %s22, 1
        %s314 = smul.u32 8, %s27
        %p315 = scmp.lt.s32.totalorder %s314, 15
        %s316 = scalar_select %p315, %s314, 15
        %s317 = smul.addr %s316, 8
        %s318 = scalar_lea.vmem %s0, %s317
        %p319 = pneg %p48
        %p320 = pneg %p45
        %s321 = smul.u32 4, %s27
        %p322 = scmp.lt.s32.totalorder %s321, 7
        %s323 = scalar_select %p322, %s321, 7
        %s324 = smul.addr %s323, 8
        %s325 = scalar_lea.vmem %s1, %s324
        %p326 = pneg %p74
        %p327 = pneg %p71
        %p328 = pneg %p95
        %p329 = pneg %p92
        %p330 = pneg %p116
        %p331 = pneg %p113
        %p332 = pneg %p137
        %p333 = pneg %p134
        %p334 = pneg %p158
        %p335 = pneg %p155
        %p336 = pneg %p179
        %p337 = pneg %p176
        %p338 = pneg %p200
        %p339 = pneg %p197
        %p340 = pneg %p226
        %p341 = pneg %p223
        %s342 = sand.u32 %s213, 1
        %s343 = scalar_lea.sflag [#allocation3], %s342
        %s344 = sand.u32 %s213, 1
        %s345 = smul.addr %s344, 8
        %s346 = scalar_lea.vmem [#allocation2], %s345
        %p347 = pneg %p252
        %p348 = pneg %p249
        %s349 = sand.u32 %s239, 1
        %s350 = scalar_lea.sflag [#allocation5], %s349
        %s351 = sand.u32 %s239, 1
        %s352 = smul.addr %s351, 8
        %s353 = scalar_lea.vmem [#allocation4], %s352
        %s354 = smul.u32 8, %s27
        %p355 = scmp.lt.s32.totalorder %s354, 15
        %s356 = scalar_select %p355, %s354, 15
        %s357 = smul.addr %s356, 8
        %s358 = scalar_lea.vmem %s0, %s357
        %s359 = smul.u32 8, %s27
        %s360 = smul.u32 4, %s27
        %p361 = scmp.lt.s32.totalorder %s360, 7
        %s362 = scalar_select %p361, %s360, 7
        %s363 = smul.addr %s362, 8
        %s364 = scalar_lea.vmem %s1, %s363
        %s365 = smul.u32 4, %s27
        %v366 = vld [vmem:[%s358] sm:$0xff]
        %v367 = vld [vmem:[%s358 + $0x8] sm:$0xff]
        %v368 = vld [vmem:[%s358 + $0x10] sm:$0xff]
        %v369 = vld [vmem:[%s358 + $0x18] sm:$0xff]
        %v370 = vld [vmem:[%s358 + $0x20] sm:$0xff]
        %v371 = vld [vmem:[%s358 + $0x28] sm:$0xff]
        %v372 = vld [vmem:[%s358 + $0x30] sm:$0xff]
        %v373 = vld [vmem:[%s358 + $0x38] sm:$0xff]
        %v374 = vld [vmem:[%s364] sm:$0xff]
        %v375 = vld [vmem:[%s364 + $0x8] sm:$0xff]
        %v376 = vld [vmem:[%s364 + $0x10] sm:$0xff]
        %v377 = vld [vmem:[%s364 + $0x18] sm:$0xff]
        %v378 = vld [vmem:[%s2] sm:$0xff]
        %v379 = vld [vmem:[%s2 + $0x8] sm:$0xff]
        %v380 = vld [vmem:[%s2 + $0x10] sm:$0xff]
        %v381 = vld [vmem:[%s2 + $0x18] sm:$0xff]
        %v382 = vld [vmem:[%s3] sm:$0x1]
        %v384 = vperm.slane %v382, 0
        %vm386 = vcmask 261120
        %v388 = vsel %vm386, %v366, 0
        %v391 = vsel %vm386, %v367, 0
        %v394 = vsel %vm386, %v368, 0
        %v397 = vsel %vm386, %v369, 0
        %v400 = vsel %vm386, %v370, 0
        %v403 = vsel %vm386, %v371, 0
        %v406 = vsel %vm386, %v372, 0
        %v409 = vsel %vm386, %v373, 0
        %411 = vmatpush.msra.mxu0 0.0
        %412 = vmatpush.msra.mxu0 0.0
        %413 = vmatpush.msra.mxu0 0.0
        %414 = vmatpush.msra.mxu0 0.0
        %415 = vmatpush.msra.mxu0 0.0
        %416 = vmatpush.msra.mxu0 0.0
        %417 = vmatpush.msra.mxu0 0.0
        %418 = vmatpush.msra.mxu0 0.0
        %419 = vmatpush.msra.mxu0 0.0
        %420 = vmatpush.msra.mxu0 0.0
        %421 = vmatpush.msra.mxu0 0.0
        %422 = vmatpush.msra.mxu0 0.0
        %423 = vmatpush.msra.mxu0 %v381
        %424 = vmatpush.msra.mxu0 %v380
        %425 = vmatpush.msra.mxu0 %v379
        %426 = vmatpush.msra.mxu0 %v378
        %427 = vmatmul.f32.gmra.mxu0 %v388
        %v428 = vpop.f32.mrf.mxu0
        %v429 = vadd.f32 %v384, %v428
        %430 = vmatmul.f32.gmra.mxu0 %v391
        %v431 = vpop.f32.mrf.mxu0
        %v432 = vadd.f32 %v384, %v431
        %433 = vmatmul.f32.gmra.mxu0 %v394
        %v434 = vpop.f32.mrf.mxu0
        %v435 = vadd.f32 %v384, %v434
        %436 = vmatmul.f32.gmra.mxu0 %v397
        %v437 = vpop.f32.mrf.mxu0
        %v438 = vadd.f32 %v384, %v437
        %439 = vmatmul.f32.gmra.mxu0 %v400
        %v440 = vpop.f32.mrf.mxu0
        %v441 = vadd.f32 %v384, %v440
        %442 = vmatmul.f32.gmra.mxu0 %v403
        %v443 = vpop.f32.mrf.mxu0
        %v444 = vadd.f32 %v384, %v443
        %445 = vmatmul.f32.gmra.mxu0 %v406
        %v446 = vpop.f32.mrf.mxu0
        %v447 = vadd.f32 %v384, %v446
        %448 = vmatmul.f32.gmra.mxu0 %v409
        %v449 = vpop.f32.mrf.mxu0
        %v450 = vadd.f32 %v384, %v449
        %451 = vdwg.mxu0
        %v452 = vmax.f32 %v429, 0.0
        %v453 = vmax.f32 %v432, 0.0
        %v454 = vmax.f32 %v435, 0.0
        %v455 = vmax.f32 %v438, 0.0
        %v456 = vmax.f32 %v441, 0.0
        %v457 = vmax.f32 %v444, 0.0
        %v458 = vmax.f32 %v447, 0.0
        %v459 = vmax.f32 %v450, 0.0
        %v460 = vld [vmem:[%s4] sm:$0xff]
        %v461 = vld [vmem:[%s4 + $0x8] sm:$0xff]
        %v462 = vld [vmem:[%s4 + $0x10] sm:$0xff]
        %v463 = vld [vmem:[%s4 + $0x18] sm:$0xff]
        %v464 = vld [vmem:[%s5] sm:$0x1]
        %v466 = vperm.slane %v464, 0
        %v469 = vsel %vm386, %v374, 0
        %v472 = vsel %vm386, %v375, 0
        %v475 = vsel %vm386, %v376, 0
        %v478 = vsel %vm386, %v377, 0
        %480 = vmatpush.msra.mxu0 0.0
        %481 = vmatpush.msra.mxu0 0.0
        %482 = vmatpush.msra.mxu0 0.0
        %483 = vmatpush.msra.mxu0 0.0
        %484 = vmatpush.msra.mxu0 0.0
        %485 = vmatpush.msra.mxu0 0.0
        %486 = vmatpush.msra.mxu0 0.0
        %487 = vmatpush.msra.mxu0 0.0
        %488 = vmatpush.msra.mxu0 0.0
        %489 = vmatpush.msra.mxu0 0.0
        %490 = vmatpush.msra.mxu0 0.0
        %491 = vmatpush.msra.mxu0 0.0
        %492 = vmatpush.msra.mxu0 %v463
        %493 = vmatpush.msra.mxu0 %v462
        %494 = vmatpush.msra.mxu0 %v461
        %495 = vmatpush.msra.mxu0 %v460
        %496 = vmatmul.f32.gmra.mxu0 %v469
        %v497 = vpop.f32.mrf.mxu0
        %v498 = vadd.f32 %v466, %v497
        %499 = vmatmul.f32.gmra.mxu0 %v472
        %v500 = vpop.f32.mrf.mxu0
        %v501 = vadd.f32 %v466, %v500
        %502 = vmatmul.f32.gmra.mxu0 %v475
        %v503 = vpop.f32.mrf.mxu0
        %v504 = vadd.f32 %v466, %v503
        %505 = vmatmul.f32.gmra.mxu0 %v478
        %v506 = vpop.f32.mrf.mxu0
        %v507 = vadd.f32 %v466, %v506
        %508 = vdwg.mxu0
        %v509 = vmax.f32 %v498, 0.0
        %v510 = vmax.f32 %v501, 0.0
        %v511 = vmax.f32 %v504, 0.0
        %v512 = vmax.f32 %v507, 0.0
        %v513 = vand.u32 2147483647, %v366
        %v514 = vand.u32 2147483647, %v367
        %v515 = vand.u32 2147483647, %v368
        %v516 = vand.u32 2147483647, %v369
        %v517 = vand.u32 2147483647, %v370
        %v518 = vand.u32 2147483647, %v371
        %v519 = vand.u32 2147483647, %v372
        %v520 = vand.u32 2147483647, %v373
        %v521 = vsel %vm386, %v513, 0.0
        %522 = vadd.xlane.f32.xlu0 %v521
        %v523 = vpop.xlane.xlu0 %522
        %v524 = vsel %vm386, %v514, 0.0
        %525 = vadd.xlane.f32.xlu0 %v524
        %v526 = vpop.xlane.xlu0 %525
        %v527 = vsel %vm386, %v515, 0.0
        %528 = vadd.xlane.f32.xlu0 %v527
        %v529 = vpop.xlane.xlu0 %528
        %v530 = vsel %vm386, %v516, 0.0
        %531 = vadd.xlane.f32.xlu0 %v530
        %v532 = vpop.xlane.xlu0 %531
        %v533 = vsel %vm386, %v517, 0.0
        %534 = vadd.xlane.f32.xlu0 %v533
        %v535 = vpop.xlane.xlu0 %534
        %v536 = vsel %vm386, %v518, 0.0
        %537 = vadd.xlane.f32.xlu0 %v536
        %v538 = vpop.xlane.xlu0 %537
        %v539 = vsel %vm386, %v519, 0.0
        %540 = vadd.xlane.f32.xlu0 %v539
        %v541 = vpop.xlane.xlu0 %540
        %v542 = vsel %vm386, %v520, 0.0
        %543 = vadd.xlane.f32.xlu0 %v542
        %v544 = vpop.xlane.xlu0 %543
        %v545 = vld [vmem:[%s6] sm:$0x3]
        %v547 = vrot.slane %v545, 1
        %v548 = vperm.slane %v545, 0
        %v549 = vperm.slane %v547, 0
        %v552 = vmul.f32 %v452, %v548
        %v553 = vmul.f32 %v453, %v548
        %v554 = vmul.f32 %v452, %v549
        %v555 = vmul.f32 %v453, %v549
        %v556 = vmul.f32 %v454, %v548
        %v557 = vmul.f32 %v455, %v548
        %v558 = vmul.f32 %v454, %v549
        %v559 = vmul.f32 %v455, %v549
        %v560 = vmul.f32 %v456, %v548
        %v561 = vmul.f32 %v457, %v548
        %v562 = vmul.f32 %v456, %v549
        %v563 = vmul.f32 %v457, %v549
        %v564 = vmul.f32 %v458, %v548
        %v565 = vmul.f32 %v459, %v548
        %v566 = vmul.f32 %v458, %v549
        %v567 = vmul.f32 %v459, %v549
        %vm568 = vcmask 523264
        %v570 = vsel %vm568, %v552, 0
        %v573 = vsel %vm568, %v553, 0
        %v576 = vsel %vm568, %v554, 0
        %v579 = vsel %vm568, %v555, 0
        %v582 = vsel %vm568, %v509, 0
        %584 = vmatpush.xpose.msra.mxu0 0.0
        %585 = vmatpush.xpose.msra.mxu0 0.0
        %586 = vmatpush.xpose.msra.mxu0 0.0
        %587 = vmatpush.xpose.msra.mxu0 0.0
        %588 = vmatpush.xpose.msra.mxu0 0.0
        %589 = vmatpush.xpose.msra.mxu0 0.0
        %590 = vmatpush.xpose.msra.mxu0 0.0
        %591 = vmatpush.xpose.msra.mxu0 0.0
        %592 = vmatpush.xpose.msra.mxu0 0.0
        %593 = vmatpush.xpose.msra.mxu0 0.0
        %594 = vmatpush.xpose.msra.mxu0 0.0
        %595 = vmatpush.xpose.msra.mxu0 0.0
        %596 = vmatpush.xpose.msra.mxu0 0.0
        %597 = vmatpush.xpose.msra.mxu0 0.0
        %598 = vmatpush.xpose.msra.mxu0 0.0
        %599 = vmatpush.xpose.msra.mxu0 %v582
        %600 = vmatmul.f32.gmra.mxu0 %v570
        %v601 = vpop.f32.mrf.mxu0
        %v602 = vadd.f32 0.0, %v601
        %603 = vmatmul.f32.gmra.mxu0 %v573
        %v604 = vpop.f32.mrf.mxu0
        %v605 = vadd.f32 0.0, %v604
        %606 = vmatmul.f32.gmra.mxu0 %v576
        %v607 = vpop.f32.mrf.mxu0
        %v608 = vadd.f32 0.0, %v607
        %609 = vmatmul.f32.gmra.mxu0 %v579
        %v610 = vpop.f32.mrf.mxu0
        %v611 = vadd.f32 0.0, %v610
        %612 = vdwg.mxu0
        %v614 = vsel %vm568, %v556, 0
        %v617 = vsel %vm568, %v557, 0
        %v620 = vsel %vm568, %v558, 0
        %v623 = vsel %vm568, %v559, 0
        %v626 = vsel %vm568, %v510, 0
        %628 = vmatpush.xpose.msra.mxu0 0.0
        %629 = vmatpush.xpose.msra.mxu0 0.0
        %630 = vmatpush.xpose.msra.mxu0 0.0
        %631 = vmatpush.xpose.msra.mxu0 0.0
        %632 = vmatpush.xpose.msra.mxu0 0.0
        %633 = vmatpush.xpose.msra.mxu0 0.0
        %634 = vmatpush.xpose.msra.mxu0 0.0
        %635 = vmatpush.xpose.msra.mxu0 0.0
        %636 = vmatpush.xpose.msra.mxu0 0.0
        %637 = vmatpush.xpose.msra.mxu0 0.0
        %638 = vmatpush.xpose.msra.mxu0 0.0
        %639 = vmatpush.xpose.msra.mxu0 0.0
        %640 = vmatpush.xpose.msra.mxu0 0.0
        %641 = vmatpush.xpose.msra.mxu0 0.0
        %642 = vmatpush.xpose.msra.mxu0 0.0
        %643 = vmatpush.xpose.msra.mxu0 %v626
        %644 = vmatmul.f32.gmra.mxu0 %v614
        %v645 = vpop.f32.mrf.mxu0
        %v646 = vadd.f32 0.0, %v645
        %647 = vmatmul.f32.gmra.mxu0 %v617
        %v648 = vpop.f32.mrf.mxu0
        %v649 = vadd.f32 0.0, %v648
        %650 = vmatmul.f32.gmra.mxu0 %v620
        %v651 = vpop.f32.mrf.mxu0
        %v652 = vadd.f32 0.0, %v651
        %653 = vmatmul.f32.gmra.mxu0 %v623
        %v654 = vpop.f32.mrf.mxu0
        %v655 = vadd.f32 0.0, %v654
        %656 = vdwg.mxu0
        %v658 = vsel %vm568, %v560, 0
        %v661 = vsel %vm568, %v561, 0
        %v664 = vsel %vm568, %v562, 0
        %v667 = vsel %vm568, %v563, 0
        %v670 = vsel %vm568, %v511, 0
        %672 = vmatpush.xpose.msra.mxu0 0.0
        %673 = vmatpush.xpose.msra.mxu0 0.0
        %674 = vmatpush.xpose.msra.mxu0 0.0
        %675 = vmatpush.xpose.msra.mxu0 0.0
        %676 = vmatpush.xpose.msra.mxu0 0.0
        %677 = vmatpush.xpose.msra.mxu0 0.0
        %678 = vmatpush.xpose.msra.mxu0 0.0
        %679 = vmatpush.xpose.msra.mxu0 0.0
        %680 = vmatpush.xpose.msra.mxu0 0.0
        %681 = vmatpush.xpose.msra.mxu0 0.0
        %682 = vmatpush.xpose.msra.mxu0 0.0
        %683 = vmatpush.xpose.msra.mxu0 0.0
        %684 = vmatpush.xpose.msra.mxu0 0.0
        %685 = vmatpush.xpose.msra.mxu0 0.0
        %686 = vmatpush.xpose.msra.mxu0 0.0
        %687 = vmatpush.xpose.msra.mxu0 %v670
        %688 = vmatmul.f32.gmra.mxu0 %v658
        %v689 = vpop.f32.mrf.mxu0
        %v690 = vadd.f32 0.0, %v689
        %691 = vmatmul.f32.gmra.mxu0 %v661
        %v692 = vpop.f32.mrf.mxu0
        %v693 = vadd.f32 0.0, %v692
        %694 = vmatmul.f32.gmra.mxu0 %v664
        %v695 = vpop.f32.mrf.mxu0
        %v696 = vadd.f32 0.0, %v695
        %697 = vmatmul.f32.gmra.mxu0 %v667
        %v698 = vpop.f32.mrf.mxu0
        %v699 = vadd.f32 0.0, %v698
        %700 = vdwg.mxu0
        %v702 = vsel %vm568, %v564, 0
        %v705 = vsel %vm568, %v565, 0
        %v708 = vsel %vm568, %v566, 0
        %v711 = vsel %vm568, %v567, 0
        %v714 = vsel %vm568, %v512, 0
        %716 = vmatpush.xpose.msra.mxu0 0.0
        %717 = vmatpush.xpose.msra.mxu0 0.0
        %718 = vmatpush.xpose.msra.mxu0 0.0
        %719 = vmatpush.xpose.msra.mxu0 0.0
        %720 = vmatpush.xpose.msra.mxu0 0.0
        %721 = vmatpush.xpose.msra.mxu0 0.0
        %722 = vmatpush.xpose.msra.mxu0 0.0
        %723 = vmatpush.xpose.msra.mxu0 0.0
        %724 = vmatpush.xpose.msra.mxu0 0.0
        %725 = vmatpush.xpose.msra.mxu0 0.0
        %726 = vmatpush.xpose.msra.mxu0 0.0
        %727 = vmatpush.xpose.msra.mxu0 0.0
        %728 = vmatpush.xpose.msra.mxu0 0.0
        %729 = vmatpush.xpose.msra.mxu0 0.0
        %730 = vmatpush.xpose.msra.mxu0 0.0
        %731 = vmatpush.xpose.msra.mxu0 %v714
        %732 = vmatmul.f32.gmra.mxu0 %v702
        %v733 = vpop.f32.mrf.mxu0
        %v734 = vadd.f32 0.0, %v733
        %735 = vmatmul.f32.gmra.mxu0 %v705
        %v736 = vpop.f32.mrf.mxu0
        %v737 = vadd.f32 0.0, %v736
        %738 = vmatmul.f32.gmra.mxu0 %v708
        %v739 = vpop.f32.mrf.mxu0
        %v740 = vadd.f32 0.0, %v739
        %741 = vmatmul.f32.gmra.mxu0 %v711
        %v742 = vpop.f32.mrf.mxu0
        %v743 = vadd.f32 0.0, %v742
        %744 = vdwg.mxu0
        %vm745 = vcmp.eq.f32.partialorder %v523, 0.0
        %vm746 = vcmp.eq.f32.partialorder %v526, 0.0
        %vm747 = vcmp.eq.f32.partialorder %v529, 0.0
        %vm748 = vcmp.eq.f32.partialorder %v532, 0.0
        %vm749 = vcmp.eq.f32.partialorder %v535, 0.0
        %vm750 = vcmp.eq.f32.partialorder %v538, 0.0
        %vm751 = vcmp.eq.f32.partialorder %v541, 0.0
        %vm752 = vcmp.eq.f32.partialorder %v544, 0.0
        %v753 = vsel %vm745, 1, 0
        %v754 = vsel %vm746, 1, 0
        %v755 = vsel %vm747, 1, 0
        %v756 = vsel %vm748, 1, 0
        %v757 = vsel %vm749, 1, 0
        %v758 = vsel %vm750, 1, 0
        %v759 = vsel %vm751, 1, 0
        %v760 = vsel %vm752, 1, 0
        %vm761 = vcmp.eq.s32.totalorder %v753, 1
        %vm762 = vcmp.eq.s32.totalorder %v754, 1
        %vm763 = vcmp.eq.s32.totalorder %v755, 1
        %vm764 = vcmp.eq.s32.totalorder %v756, 1
        %vm765 = vcmp.eq.s32.totalorder %v757, 1
        %vm766 = vcmp.eq.s32.totalorder %v758, 1
        %vm767 = vcmp.eq.s32.totalorder %v759, 1
        %vm768 = vcmp.eq.s32.totalorder %v760, 1
        %v769 = vsel %vm761, -inf, %v602
        %v770 = vsel %vm762, -inf, %v605
        %v771 = vsel %vm761, -inf, %v608
        %v772 = vsel %vm762, -inf, %v611
        %v773 = vsel %vm763, -inf, %v646
        %v774 = vsel %vm764, -inf, %v649
        %v775 = vsel %vm763, -inf, %v652
        %v776 = vsel %vm764, -inf, %v655
        %v777 = vsel %vm765, -inf, %v690
        %v778 = vsel %vm766, -inf, %v693
        %v779 = vsel %vm765, -inf, %v696
        %v780 = vsel %vm766, -inf, %v699
        %v781 = vsel %vm767, -inf, %v734
        %v782 = vsel %vm768, -inf, %v737
        %v783 = vsel %vm767, -inf, %v740
        %v784 = vsel %vm768, -inf, %v743
        %v785 = vrot.slane %v773, 4
        %vm786 = vcmask 1047556
        %v787 = vsel %vm786, %v785, %v769
        %v788 = vrot.slane %v769, 4
        %v789 = vsel %vm786, %v773, %v788
        %v791 = vunpack.c.l.s4 1983009808
        %v792 = vunpack.c.0.s8 %v791
        %v793 = vperm.slane %v787, %v792
        %v795 = vunpack.c.l.s4 1983009808
        %v796 = vunpack.c.0.s8 %v795
        %v797 = vperm.slane %v789, %v796
        %v798 = vrot.slane %v775, 4
        %v799 = vsel %vm786, %v798, %v771
        %v800 = vrot.slane %v771, 4
        %v801 = vsel %vm786, %v775, %v800
        %v803 = vunpack.c.l.s4 1983009808
        %v804 = vunpack.c.0.s8 %v803
        %v805 = vperm.slane %v799, %v804
        %v807 = vunpack.c.l.s4 1983009808
        %v808 = vunpack.c.0.s8 %v807
        %v809 = vperm.slane %v801, %v808
        %v810 = vrot.slane %v781, 4
        %v811 = vsel %vm786, %v810, %v777
        %v812 = vrot.slane %v777, 4
        %v813 = vsel %vm786, %v781, %v812
        %v815 = vunpack.c.l.s4 1983009808
        %v816 = vunpack.c.0.s8 %v815
        %v817 = vperm.slane %v811, %v816
        %v819 = vunpack.c.l.s4 1983009808
        %v820 = vunpack.c.0.s8 %v819
        %v821 = vperm.slane %v813, %v820
        %v822 = vrot.slane %v783, 4
        %v823 = vsel %vm786, %v822, %v779
        %v824 = vrot.slane %v779, 4
        %v825 = vsel %vm786, %v783, %v824
        %v827 = vunpack.c.l.s4 1983009808
        %v828 = vunpack.c.0.s8 %v827
        %v829 = vperm.slane %v823, %v828
        %v831 = vunpack.c.l.s4 1983009808
        %v832 = vunpack.c.0.s8 %v831
        %v833 = vperm.slane %v825, %v832
        %v834 = vrot.slane %v805, 4
        %v835 = vsel %vm786, %v834, %v793
        %v836 = vrot.slane %v793, 4
        %v837 = vsel %vm786, %v805, %v836
        %v839 = vunpack.c.l.s4 1934713408
        %v840 = vunpack.c.0.s8 %v839
        %v841 = vperm.slane %v835, %v840
        %v843 = vunpack.c.l.s4 1934713408
        %v844 = vunpack.c.0.s8 %v843
        %v845 = vperm.slane %v837, %v844
        %v846 = vrot.slane %v809, 4
        %v847 = vsel %vm786, %v846, %v797
        %v848 = vrot.slane %v797, 4
        %v849 = vsel %vm786, %v809, %v848
        %v851 = vunpack.c.l.s4 1934713408
        %v852 = vunpack.c.0.s8 %v851
        %v853 = vperm.slane %v847, %v852
        %v855 = vunpack.c.l.s4 1934713408
        %v856 = vunpack.c.0.s8 %v855
        %v857 = vperm.slane %v849, %v856
        %v858 = vrot.slane %v829, 4
        %v859 = vsel %vm786, %v858, %v817
        %v860 = vrot.slane %v817, 4
        %v861 = vsel %vm786, %v829, %v860
        %v863 = vunpack.c.l.s4 1934713408
        %v864 = vunpack.c.0.s8 %v863
        %v865 = vperm.slane %v859, %v864
        %v867 = vunpack.c.l.s4 1934713408
        %v868 = vunpack.c.0.s8 %v867
        %v869 = vperm.slane %v861, %v868
        %v870 = vrot.slane %v833, 4
        %v871 = vsel %vm786, %v870, %v821
        %v872 = vrot.slane %v821, 4
        %v873 = vsel %vm786, %v833, %v872
        %v875 = vunpack.c.l.s4 1934713408
        %v876 = vunpack.c.0.s8 %v875
        %v877 = vperm.slane %v871, %v876
        %v879 = vunpack.c.l.s4 1934713408
        %v880 = vunpack.c.0.s8 %v879
        %v881 = vperm.slane %v873, %v880
        %v882 = vrot.slane %v865, 4
        %v883 = vsel %vm786, %v882, %v841
        %v884 = vrot.slane %v841, 4
        %v885 = vsel %vm786, %v865, %v884
        %v886 = vrot.slane %v869, 4
        %v887 = vsel %vm786, %v886, %v845
        %v888 = vrot.slane %v845, 4
        %v889 = vsel %vm786, %v869, %v888
        %v890 = vrot.slane %v877, 4
        %v891 = vsel %vm786, %v890, %v853
        %v892 = vrot.slane %v853, 4
        %v893 = vsel %vm786, %v877, %v892
        %v894 = vrot.slane %v881, 4
        %v895 = vsel %vm786, %v894, %v857
        %v896 = vrot.slane %v857, 4
        %v897 = vsel %vm786, %v881, %v896
        %v898 = vrot.slane %v774, 4
        %v899 = vsel %vm786, %v898, %v770
        %v900 = vrot.slane %v770, 4
        %v901 = vsel %vm786, %v774, %v900
        %v903 = vunpack.c.l.s4 1983009808
        %v904 = vunpack.c.0.s8 %v903
        %v905 = vperm.slane %v899, %v904
        %v907 = vunpack.c.l.s4 1983009808
        %v908 = vunpack.c.0.s8 %v907
        %v909 = vperm.slane %v901, %v908
        %v910 = vrot.slane %v776, 4
        %v911 = vsel %vm786, %v910, %v772
        %v912 = vrot.slane %v772, 4
        %v913 = vsel %vm786, %v776, %v912
        %v915 = vunpack.c.l.s4 1983009808
        %v916 = vunpack.c.0.s8 %v915
        %v917 = vperm.slane %v911, %v916
        %v919 = vunpack.c.l.s4 1983009808
        %v920 = vunpack.c.0.s8 %v919
        %v921 = vperm.slane %v913, %v920
        %v922 = vrot.slane %v782, 4
        %v923 = vsel %vm786, %v922, %v778
        %v924 = vrot.slane %v778, 4
        %v925 = vsel %vm786, %v782, %v924
        %v927 = vunpack.c.l.s4 1983009808
        %v928 = vunpack.c.0.s8 %v927
        %v929 = vperm.slane %v923, %v928
        %v931 = vunpack.c.l.s4 1983009808
        %v932 = vunpack.c.0.s8 %v931
        %v933 = vperm.slane %v925, %v932
        %v934 = vrot.slane %v784, 4
        %v935 = vsel %vm786, %v934, %v780
        %v936 = vrot.slane %v780, 4
        %v937 = vsel %vm786, %v784, %v936
        %v939 = vunpack.c.l.s4 1983009808
        %v940 = vunpack.c.0.s8 %v939
        %v941 = vperm.slane %v935, %v940
        %v943 = vunpack.c.l.s4 1983009808
        %v944 = vunpack.c.0.s8 %v943
        %v945 = vperm.slane %v937, %v944
        %v946 = vrot.slane %v917, 4
        %v947 = vsel %vm786, %v946, %v905
        %v948 = vrot.slane %v905, 4
        %v949 = vsel %vm786, %v917, %v948
        %v951 = vunpack.c.l.s4 1934713408
        %v952 = vunpack.c.0.s8 %v951
        %v953 = vperm.slane %v947, %v952
        %v955 = vunpack.c.l.s4 1934713408
        %v956 = vunpack.c.0.s8 %v955
        %v957 = vperm.slane %v949, %v956
        %v958 = vrot.slane %v921, 4
        %v959 = vsel %vm786, %v958, %v909
        %v960 = vrot.slane %v909, 4
        %v961 = vsel %vm786, %v921, %v960
        %v963 = vunpack.c.l.s4 1934713408
        %v964 = vunpack.c.0.s8 %v963
        %v965 = vperm.slane %v959, %v964
        %v967 = vunpack.c.l.s4 1934713408
        %v968 = vunpack.c.0.s8 %v967
        %v969 = vperm.slane %v961, %v968
        %v970 = vrot.slane %v941, 4
        %v971 = vsel %vm786, %v970, %v929
        %v972 = vrot.slane %v929, 4
        %v973 = vsel %vm786, %v941, %v972
        %v975 = vunpack.c.l.s4 1934713408
        %v976 = vunpack.c.0.s8 %v975
        %v977 = vperm.slane %v971, %v976
        %v979 = vunpack.c.l.s4 1934713408
        %v980 = vunpack.c.0.s8 %v979
        %v981 = vperm.slane %v973, %v980
        %v982 = vrot.slane %v945, 4
        %v983 = vsel %vm786, %v982, %v933
        %v984 = vrot.slane %v933, 4
        %v985 = vsel %vm786, %v945, %v984
        %v987 = vunpack.c.l.s4 1934713408
        %v988 = vunpack.c.0.s8 %v987
        %v989 = vperm.slane %v983, %v988
        %v991 = vunpack.c.l.s4 1934713408
        %v992 = vunpack.c.0.s8 %v991
        %v993 = vperm.slane %v985, %v992
        %v994 = vrot.slane %v977, 4
        %v995 = vsel %vm786, %v994, %v953
        %v996 = vrot.slane %v953, 4
        %v997 = vsel %vm786, %v977, %v996
        %v998 = vrot.slane %v981, 4
        %v999 = vsel %vm786, %v998, %v957
        %v1000 = vrot.slane %v957, 4
        %v1001 = vsel %vm786, %v981, %v1000
        %v1002 = vrot.slane %v989, 4
        %v1003 = vsel %vm786, %v1002, %v965
        %v1004 = vrot.slane %v965, 4
        %v1005 = vsel %vm786, %v989, %v1004
        %v1006 = vrot.slane %v993, 4
        %v1007 = vsel %vm786, %v1006, %v969
        %v1008 = vrot.slane %v969, 4
        %v1009 = vsel %vm786, %v993, %v1008
        %1011 = vrot.lane.b32.xlu0 %v885, 8
        %v1012 = vpop.permute.xlu0 %1011
        %1015 = vrot.lane.b32.xlu0 %v887, 16
        %v1016 = vpop.permute.xlu0 %1015
        %1019 = vrot.lane.b32.xlu0 %v889, 24
        %v1020 = vpop.permute.xlu0 %1019
        %1023 = vrot.lane.b32.xlu0 %v891, 32
        %v1024 = vpop.permute.xlu0 %1023
        %1027 = vrot.lane.b32.xlu0 %v893, 40
        %v1028 = vpop.permute.xlu0 %1027
        %1031 = vrot.lane.b32.xlu0 %v895, 48
        %v1032 = vpop.permute.xlu0 %1031
        %1035 = vrot.lane.b32.xlu0 %v897, 56
        %v1036 = vpop.permute.xlu0 %1035
        %1039 = vrot.lane.b32.xlu0 %v995, 64
        %v1040 = vpop.permute.xlu0 %1039
        %1043 = vrot.lane.b32.xlu0 %v997, 72
        %v1044 = vpop.permute.xlu0 %1043
        %1047 = vrot.lane.b32.xlu0 %v999, 80
        %v1048 = vpop.permute.xlu0 %1047
        %1051 = vrot.lane.b32.xlu0 %v1001, 88
        %v1052 = vpop.permute.xlu0 %1051
        %1055 = vrot.lane.b32.xlu0 %v1003, 96
        %v1056 = vpop.permute.xlu0 %1055
        %1059 = vrot.lane.b32.xlu0 %v1005, 104
        %v1060 = vpop.permute.xlu0 %1059
        %1063 = vrot.lane.b32.xlu0 %v1007, 112
        %v1064 = vpop.permute.xlu0 %1063
        %1067 = vrot.lane.b32.xlu0 %v1009, 120
        %v1068 = vpop.permute.xlu0 %1067
        %vm1070 = vcmask 64512
        %v1071 = vsel %vm1070, %v883, %v1012
        %vm1072 = vcmask 130048
        %v1073 = vsel %vm1072, %v1071, %v1016
        %vm1074 = vcmask 195584
        %v1075 = vsel %vm1074, %v1073, %v1020
        %v1076 = vsel %vm386, %v1075, %v1024
        %vm1077 = vcmask 326656
        %v1078 = vsel %vm1077, %v1076, %v1028
        %vm1079 = vcmask 392192
        %v1080 = vsel %vm1079, %v1078, %v1032
        %vm1081 = vcmask 457728
        %v1082 = vsel %vm1081, %v1080, %v1036
        %v1083 = vsel %vm568, %v1082, %v1040
        %vm1084 = vcmask 588800
        %v1085 = vsel %vm1084, %v1083, %v1044
        %vm1086 = vcmask 654336
        %v1087 = vsel %vm1086, %v1085, %v1048
        %vm1088 = vcmask 719872
        %v1089 = vsel %vm1088, %v1087, %v1052
        %vm1090 = vcmask 785408
        %v1091 = vsel %vm1090, %v1089, %v1056
        %vm1092 = vcmask 850944
        %v1093 = vsel %vm1092, %v1091, %v1060
        %vm1094 = vcmask 916480
        %v1095 = vsel %vm1094, %v1093, %v1064
        %vm1096 = vcmask 982016
        %v1097 = vsel %vm1096, %v1095, %v1068
        %1098 = vmax.xlane.f32.xlu0 %v1097
        %v1099 = vpop.xlane.xlu0 %1098
        %v1100 = vsub.f32 %v1097, %v1099
        %v1101 = vmul.f32 %v1100, 1.442695
        %v1102 = vpow.pop %v1101
        %1103 = vadd.xlane.f32.xlu0 %v1102
        %v1104 = vpop.xlane.xlu0 %1103
        %v1105 = vrcp.pop %v1104
        %v1106 = vmul.f32 %v1102, %v1105
        %1107 = vst [vmem:[%s346] sm:$0xff] %v1106
        %v1108 = vld [vmem:[%s7] sm:$0xff]
        %1110 = vset.pattern.permute.xlu0 0
        %1111 = vperm.xlu0 %1110, %v1108
        %v1112 = vpop.permute.xlu0 %1111
        %v1114 = vadd.f32 %v1097, %v1112
        %1115 = vst [vmem:[%s353] sm:$0xff] %v1114
        %s1116 = sand.u32 %s213, 1
        %s1117 = scalar_lea.sflag [#allocation3], %s1116
        %s1118 = sand.u32 %s213, 1
        %s1119 = smul.addr %s1118, 8
        %s1120 = scalar_lea.vmem [#allocation2], %s1119
        %s1121 = sand.u32 %s239, 1
        %s1122 = scalar_lea.sflag [#allocation5], %s1121
        %s1123 = sand.u32 %s239, 1
        %s1124 = smul.addr %s1123, 8
        %s1125 = scalar_lea.vmem [#allocation4], %s1124
        // Predicated region
        $region53: #{tpu_custom_call.1} parent=51 // pred_check
          %p1126 = pneg %p223
        $region54: #{tpu_custom_call.1} parent=51 // pred_check_branch
          %1128 = sbr.rel (%p1126) target = $region56
        $region55: #{tpu_custom_call.1} parent=51 // pred_region
          %1130 = vsyncadd %s1117, 0
          %s1131 = smul.addr %s27, 8
          %s1132 = scalar_lea.hbm %s8, %s1131
          %s1134 = sshll.u32 %s1120, 4
          %s1135 = int_to_ptr.vmem [resolvable:$true] %s1134
          %s1136 = sshll.u32 %s1132, 4
          %s1137 = int_to_ptr.hbm [resolvable:$true] %s1136
          %1139 = dma.vmem_to_hbm [thread:$0]  %s1135, 128, %s1137, %s1117
        $region56: #{tpu_custom_call.1} parent=51 // pred_fallthru
          _
        // Predicated region
        $region57: #{tpu_custom_call.1} parent=51 // pred_check
          %p1140 = pneg %p249
        $region58: #{tpu_custom_call.1} parent=51 // pred_check_branch
          %1142 = sbr.rel (%p1140) target = $region60
        $region59: #{tpu_custom_call.1} parent=51 // pred_region
          %1144 = vsyncadd %s1122, 0
          %s1145 = smul.addr %s27, 8
          %s1146 = scalar_lea.hbm %s9, %s1145
          %s1148 = sshll.u32 %s1125, 4
          %s1149 = int_to_ptr.vmem [resolvable:$true] %s1148
          %s1150 = sshll.u32 %s1146, 4
          %s1151 = int_to_ptr.hbm [resolvable:$true] %s1150
          %1153 = dma.vmem_to_hbm [thread:$0]  %s1149, 128, %s1151, %s1122
        $region60: #{tpu_custom_call.1} parent=51 // pred_fallthru
          _
      $region52: #{tpu_custom_call.1} parent=5 // pred_fallthru
        _
      %p1154 = scmp.le.s32.totalorder 2, %s22
      // Predicated region
      $region61: #{tpu_custom_call.1} parent=5 // pred_check
        %p1155 = pneg %p1154
      $region62: #{tpu_custom_call.1} parent=5 // pred_check_branch
        %1157 = sbr.rel (%p1155) target = $region64
      $region63: #{tpu_custom_call.1} parent=5 // pred_region
        %s1158 = ssub.s32 %s22, 2
        // Predicated region
        $region65: #{tpu_custom_call.1} parent=63 // pred_check
          %p1159 = pneg %p229
        $region66: #{tpu_custom_call.1} parent=63 // pred_check_branch
          %1161 = sbr.rel (%p1159) target = $region68
        $region67: #{tpu_custom_call.1} parent=63 // pred_region
          %s1162 = sand.u32 %s214, 1
          %s1163 = scalar_lea.sflag [#allocation3], %s1162
          %s1164 = sand.u32 %s214, 1
          %s1165 = smul.addr %s1164, 8
          %s1166 = scalar_lea.vmem [#allocation2], %s1165
          %1168 = dma.done %s1163, 128
        $region68: #{tpu_custom_call.1} parent=63 // pred_fallthru
          _
        // Predicated region
        $region69: #{tpu_custom_call.1} parent=63 // pred_check
          %p1169 = pneg %p255
        $region70: #{tpu_custom_call.1} parent=63 // pred_check_branch
          %1171 = sbr.rel (%p1169) target = $region72
        $region71: #{tpu_custom_call.1} parent=63 // pred_region
          %s1172 = sand.u32 %s240, 1
          %s1173 = scalar_lea.sflag [#allocation5], %s1172
          %s1174 = sand.u32 %s240, 1
          %s1175 = smul.addr %s1174, 8
          %s1176 = scalar_lea.vmem [#allocation4], %s1175
          %1178 = dma.done %s1173, 128
        $region72: #{tpu_custom_call.1} parent=63 // pred_fallthru
          _
      $region64: #{tpu_custom_call.1} parent=5 // pred_fallthru
        _
    $region6: #{tpu_custom_call.1} parent=1 // loop_footer
      %s26 = sadd.s32 1, %s22
    $region7: #{tpu_custom_call.1} parent=1 // loop_footer_branch
      %21 = sbr.rel target = $region3
    $region8: #{tpu_custom_call.1} parent=1 // loop_exit
      _
    %1179 = vsyncpa [#allocation3], 1
    %s1180 = scalar_lea.sflag [#allocation3], 1
    %1181 = vsyncpa %s1180, 1
    %1182 = vsyncpa [#allocation5], 1
    %s1183 = scalar_lea.sflag [#allocation5], 1
    %1184 = vsyncpa %s1183, 1

</llo_original>
